<compile_context>
chip_gen: v7x
topology: tpu7x:2x2x1
jax: 0.10.0
libtpu: 0.0.40
codegen_flags: <defaults>
</compile_context>

<pallas_src>
import math

import jax
import jax.numpy as jnp
from jax.experimental import pallas as pl
from jax.experimental.pallas import tpu as pltpu

STATE_DIM = 72
ACTION_DIM = 2
HIDDEN_DIM = 64
NUM_LAYER = 3
PAD_DIM = 128                      # lane-dense hidden width (padded with exact zeros)
ACTION_PAD = 8                     # narrow action/eps/out lane width
INIT_STD = 1.0
MIN_STD = 1e-6
LOG_MIN_STD = math.log(MIN_STD)    # max_std=None -> no upper clamp


def _round_up(x, m):
    return ((x + m - 1) // m) * m


def gaussian_mlp_kernel(x_ref, eps_ref,
                        w1_ref, b1_ref, w2_ref, b2_ref, w3_ref, b3_ref,
                        log_std_ref, out_ref):
    # bf16 operands on the MXU, f32 accumulation; tanh / bias / sample math stays f32.
    x = x_ref[...].astype(jnp.bfloat16)                                   # (TB, 72)
    h = jnp.tanh(jnp.dot(x, w1_ref[...],
                         preferred_element_type=jnp.float32) + b1_ref[...])
    h = jnp.tanh(jnp.dot(h.astype(jnp.bfloat16), w2_ref[...],
                         preferred_element_type=jnp.float32) + b2_ref[...])
    mean = jnp.dot(h.astype(jnp.bfloat16), w3_ref[...],
                   preferred_element_type=jnp.float32) + b3_ref[...]      # (TB, 8)
    # std = exp(clamp(log_std, min=log(min_std))); log_std is a (1,1) SMEM scalar.
    ls = jnp.broadcast_to(log_std_ref[0, 0], (1, ACTION_PAD))
    std = jnp.exp(jnp.maximum(ls, LOG_MIN_STD))                           # EUP, (1, 8)
    out_ref[...] = mean + std * eps_ref[...]                              # fused sample


def gaussian_mlp_sample(x, eps, padded_params, *, block_b=2048):
    """Fused Pallas forward: returns dist.sample() of shape (B, ACTION_DIM)."""
    (W1, B1, W2, B2, W3, B3, LS) = padded_params
    B = x.shape[0]

    TB = _round_up(min(block_b, B), 8)          # batch tile, multiple of 8 sublanes
    if B > 1024 and B <= TB:
        # v7x megacore: make sure the grid has >=2 steps so ("parallel",) can shard
        # the batch across both TensorCores instead of idling one of them.
        TB = _round_up((B + 1) // 2, 8)
    Bp = _round_up(B, TB)

    # Only materialize padded copies when they are actually needed.
    x_in = x if Bp == B else jnp.zeros((Bp, STATE_DIM), jnp.float32).at[:B, :].set(x)
    if Bp == B and eps.shape[1] == ACTION_PAD:
        eps_in = eps
    else:
        eps_in = jnp.zeros((Bp, ACTION_PAD), jnp.float32).at[:B, :eps.shape[1]].set(eps)

    def batch_spec(feat):
        return pl.BlockSpec((TB, feat), lambda i: (i, 0))

    def const_spec(shape):
        return pl.BlockSpec(shape, lambda i: (0, 0))     # VMEM-resident across grid

    out = pl.pallas_call(
        gaussian_mlp_kernel,
        out_shape=jax.ShapeDtypeStruct((Bp, ACTION_PAD), jnp.float32),
        grid_spec=pltpu.PrefetchScalarGridSpec(
            num_scalar_prefetch=0,
            grid=(Bp // TB,),
            in_specs=[
                batch_spec(STATE_DIM),                   # x    (TB, 72)   f32
                batch_spec(ACTION_PAD),                  # eps  (TB, 8)    f32
                const_spec((STATE_DIM, PAD_DIM)),        # W1   (72, 128)  bf16
                const_spec((1, PAD_DIM)),                # b1   (1, 128)   f32
                const_spec((PAD_DIM, PAD_DIM)),          # W2   (128, 128) bf16
                const_spec((1, PAD_DIM)),                # b2   (1, 128)   f32
                const_spec((PAD_DIM, ACTION_PAD)),       # W3   (128, 8)   bf16
                const_spec((1, ACTION_PAD)),             # b3   (1, 8)     f32
                pl.BlockSpec(memory_space=pltpu.MemorySpace.SMEM),   # log_std (1,1)
            ],
            out_specs=pl.BlockSpec((TB, ACTION_PAD), lambda i: (i, 0)),
        ),
        compiler_params=pltpu.CompilerParams(
            dimension_semantics=("parallel",),
            vmem_limit_bytes=48 * 1024 * 1024,           # fits v7x 64 MiB VMEM budget
        ),
    )(x_in, eps_in, W1, B1, W2, B2, W3, B3, LS)

    return out[:B, :ACTION_DIM]


# ------------- parameter construction (xavier_normal weights, zero biases) -------------

def _xavier_normal(key, in_dim, out_dim):
    std = math.sqrt(2.0 / (in_dim + out_dim))
    return std * jax.random.normal(key, (in_dim, out_dim), jnp.float32)


def init_raw_params(key):
    dims = [STATE_DIM] + [HIDDEN_DIM] * (NUM_LAYER - 1) + [ACTION_DIM]
    keys = jax.random.split(key, NUM_LAYER)
    params = []
    for i in range(NUM_LAYER):
        params.append(_xavier_normal(keys[i], dims[i], dims[i + 1]))
        params.append(jnp.zeros((1, dims[i + 1]), jnp.float32))   # b_init = zeros_
    return tuple(params)


def pad_params_for_kernel(raw_params, log_std):
    """bf16 weights, zero-padded so padded lanes stay exactly 0 through tanh."""
    w1, b1, w2, b2, w3, b3 = raw_params
    bf16 = jnp.bfloat16
    W1 = jnp.zeros((STATE_DIM, PAD_DIM), bf16).at[:, :HIDDEN_DIM].set(w1.astype(bf16))
    B1 = jnp.zeros((1, PAD_DIM), jnp.float32).at[:, :HIDDEN_DIM].set(b1)
    W2 = jnp.zeros((PAD_DIM, PAD_DIM), bf16).at[:HIDDEN_DIM, :HIDDEN_DIM].set(w2.astype(bf16))
    B2 = jnp.zeros((1, PAD_DIM), jnp.float32).at[:, :HIDDEN_DIM].set(b2)
    W3 = jnp.zeros((PAD_DIM, ACTION_PAD), bf16).at[:HIDDEN_DIM, :ACTION_DIM].set(w3.astype(bf16))
    B3 = jnp.zeros((1, ACTION_PAD), jnp.float32).at[:, :ACTION_DIM].set(b3)
    LS = jnp.reshape(log_std, (1, 1)).astype(jnp.float32)        # scalar log_std (SMEM)
    return (W1, B1, W2, B2, W3, B3, LS)


# ------------- pure-JAX references for verification -------------

def reference_sample_bf16(x, eps, raw_params, log_std):
    """Same math as the kernel (bf16 weights/activations, f32 accumulation)."""
    w1, b1, w2, b2, w3, b3 = raw_params
    bf16 = jnp.bfloat16
    h = jnp.tanh(jnp.dot(x.astype(bf16), w1.astype(bf16),
                         preferred_element_type=jnp.float32) + b1)
    h = jnp.tanh(jnp.dot(h.astype(bf16), w2.astype(bf16),
                         preferred_element_type=jnp.float32) + b2)
    mean = jnp.dot(h.astype(bf16), w3.astype(bf16),
                   preferred_element_type=jnp.float32) + b3
    std = jnp.exp(jnp.maximum(log_std[0, 0], LOG_MIN_STD))
    return mean + std * eps


def reference_sample_f32(x, eps, raw_params, log_std):
    w1, b1, w2, b2, w3, b3 = raw_params
    h = jnp.tanh(x @ w1 + b1)
    h = jnp.tanh(h @ w2 + b2)
    mean = h @ w3 + b3
    std = jnp.exp(jnp.maximum(log_std[0, 0], LOG_MIN_STD))
    return mean + std * eps


if __name__ == "__main__":
    key = jax.random.PRNGKey(0)
    k_param, k_x, k_eps, k_x2, k_eps2 = jax.random.split(key, 5)

    raw_params = init_raw_params(k_param)
    log_std = jnp.full((1, 1), math.log(INIT_STD), jnp.float32)   # learnable scalar param
    padded_params = pad_params_for_kernel(raw_params, log_std)

    # Small batch, single grid step.
    batch = 8
    x = jax.random.normal(k_x, (batch, STATE_DIM), jnp.float32)
    eps = jax.random.normal(k_eps, (batch, ACTION_DIM), jnp.float32)

    sample = gaussian_mlp_sample(x, eps, padded_params)
    jax.block_until_ready(sample)
    assert sample.shape == (batch, ACTION_DIM)
    ref_bf = reference_sample_bf16(x, eps, raw_params, log_std)
    ref_f32 = reference_sample_f32(x, eps, raw_params, log_std)
    err = float(jnp.max(jnp.abs(sample - ref_bf)))
    assert jnp.allclose(sample, ref_bf, atol=5e-3, rtol=5e-3), err
    assert jnp.allclose(sample, ref_f32, atol=1e-1, rtol=1e-1)

    # Larger batch exercising a multi-step grid + ragged last tile (TB=16, Bp=48, grid=(3,)).
    batch2 = 40
    x2 = jax.random.normal(k_x2, (batch2, STATE_DIM), jnp.float32)
    eps2 = jax.random.normal(k_eps2, (batch2, ACTION_DIM), jnp.float32)
    sample2 = gaussian_mlp_sample(x2, eps2, padded_params, block_b=16)
    jax.block_until_ready(sample2)
    ref2_bf = reference_sample_bf16(x2, eps2, raw_params, log_std)
    assert sample2.shape == (batch2, ACTION_DIM)
    assert jnp.allclose(sample2, ref2_bf, atol=5e-3, rtol=5e-3)

    print("KERNEL_OK")
</pallas_src>

<mosaic_0001>
module attributes {stable_mosaic.version = 11 : i64} {
  func.func @gaussian_mlp_kernel(%arg0: i32, %arg1: memref<8x72xf32, #tpu.memory_space<vmem>>, %arg2: memref<8x8xf32, #tpu.memory_space<vmem>>, %arg3: memref<72x128xbf16, #tpu.memory_space<vmem>>, %arg4: memref<1x128xf32, #tpu.memory_space<vmem>>, %arg5: memref<128x128xbf16, #tpu.memory_space<vmem>>, %arg6: memref<1x128xf32, #tpu.memory_space<vmem>>, %arg7: memref<128x8xbf16, #tpu.memory_space<vmem>>, %arg8: memref<1x8xf32, #tpu.memory_space<vmem>>, %arg9: memref<1x1xf32, #tpu.memory_space<smem>>, %arg10: memref<8x8xf32, #tpu.memory_space<vmem>>) attributes {dimension_semantics = [#tpu.dimension_semantics<parallel>], iteration_bounds = array<i64: 1>, scalar_prefetch = 0 : i64, scratch_operands = 0 : i64, tpu.core_type = #tpu.core_type<tc>, window_params = [{transform_indices = @transform_0, window_bounds = array<i64: 8, 72>}, {transform_indices = @transform_1, window_bounds = array<i64: 8, 8>}, {pipeline_mode = #tpu.pipeline_mode<synchronous>, transform_indices = @transform_2, window_bounds = array<i64: 72, 128>}, {pipeline_mode = #tpu.pipeline_mode<synchronous>, transform_indices = @transform_3, window_bounds = array<i64: 1, 128>}, {pipeline_mode = #tpu.pipeline_mode<synchronous>, transform_indices = @transform_4, window_bounds = array<i64: 128, 128>}, {pipeline_mode = #tpu.pipeline_mode<synchronous>, transform_indices = @transform_5, window_bounds = array<i64: 1, 128>}, {pipeline_mode = #tpu.pipeline_mode<synchronous>, transform_indices = @transform_6, window_bounds = array<i64: 128, 8>}, {pipeline_mode = #tpu.pipeline_mode<synchronous>, transform_indices = @transform_7, window_bounds = array<i64: 1, 8>}, {transform_indices = @transform_8, window_bounds = array<i64: 1, 1>}, {transform_indices = @transform_9, window_bounds = array<i64: 8, 8>}]} {
    %c0 = arith.constant 0 : index
    %c0_0 = arith.constant 0 : index
    %0 = vector.load %arg1[%c0, %c0_0] : memref<8x72xf32, #tpu.memory_space<vmem>>, vector<8x72xf32>
    %1 = arith.truncf %0 : vector<8x72xf32> to vector<8x72xbf16>
    %c0_1 = arith.constant 0 : index
    %c0_2 = arith.constant 0 : index
    %2 = vector.load %arg3[%c0_1, %c0_2] : memref<72x128xbf16, #tpu.memory_space<vmem>>, vector<72x128xbf16>
    %cst = arith.constant dense<0.000000e+00> : vector<8x128xf32>
    %3 = tpu.matmul %1, %2, %cst {dimension_numbers = #tpu.dot_dimension_numbers<[1], [0], [0], [1], [0, 0, 1, 1], [], []>} : vector<8x72xbf16>, vector<72x128xbf16>, vector<8x128xf32> -> vector<8x128xf32>
    %c0_3 = arith.constant 0 : index
    %c0_4 = arith.constant 0 : index
    %4 = vector.load %arg4[%c0_3, %c0_4] : memref<1x128xf32, #tpu.memory_space<vmem>>, vector<1x128xf32>
    %5 = vector.broadcast %4 : vector<1x128xf32> to vector<8x128xf32>
    %6 = arith.addf %3, %5 : vector<8x128xf32>
    %7 = math.tanh %6 : vector<8x128xf32>
    %8 = arith.truncf %7 : vector<8x128xf32> to vector<8x128xbf16>
    %c0_5 = arith.constant 0 : index
    %c0_6 = arith.constant 0 : index
    %9 = vector.load %arg5[%c0_5, %c0_6] : memref<128x128xbf16, #tpu.memory_space<vmem>>, vector<128x128xbf16>
    %cst_7 = arith.constant dense<0.000000e+00> : vector<8x128xf32>
    %10 = tpu.matmul %8, %9, %cst_7 {dimension_numbers = #tpu.dot_dimension_numbers<[1], [0], [0], [1], [0, 0, 1, 1], [], []>} : vector<8x128xbf16>, vector<128x128xbf16>, vector<8x128xf32> -> vector<8x128xf32>
    %c0_8 = arith.constant 0 : index
    %c0_9 = arith.constant 0 : index
    %11 = vector.load %arg6[%c0_8, %c0_9] : memref<1x128xf32, #tpu.memory_space<vmem>>, vector<1x128xf32>
    %12 = vector.broadcast %11 : vector<1x128xf32> to vector<8x128xf32>
    %13 = arith.addf %10, %12 : vector<8x128xf32>
    %14 = math.tanh %13 : vector<8x128xf32>
    %15 = arith.truncf %14 : vector<8x128xf32> to vector<8x128xbf16>
    %c0_10 = arith.constant 0 : index
    %c0_11 = arith.constant 0 : index
    %16 = vector.load %arg7[%c0_10, %c0_11] : memref<128x8xbf16, #tpu.memory_space<vmem>>, vector<128x8xbf16>
    %cst_12 = arith.constant dense<0.000000e+00> : vector<8x8xf32>
    %17 = tpu.matmul %15, %16, %cst_12 {dimension_numbers = #tpu.dot_dimension_numbers<[1], [0], [0], [1], [0, 0, 1, 1], [], []>} : vector<8x128xbf16>, vector<128x8xbf16>, vector<8x8xf32> -> vector<8x8xf32>
    %c0_13 = arith.constant 0 : index
    %c0_14 = arith.constant 0 : index
    %18 = vector.load %arg8[%c0_13, %c0_14] : memref<1x8xf32, #tpu.memory_space<vmem>>, vector<1x8xf32>
    %19 = vector.broadcast %18 : vector<1x8xf32> to vector<8x8xf32>
    %20 = arith.addf %17, %19 : vector<8x8xf32>
    %c0_15 = arith.constant 0 : index
    %c0_16 = arith.constant 0 : index
    %21 = memref.load %arg9[%c0_15, %c0_16] : memref<1x1xf32, #tpu.memory_space<smem>>
    %22 = vector.broadcast %21 : f32 to vector<1x8xf32>
    %cst_17 = arith.constant -13.8155107 : f32
    %23 = vector.broadcast %cst_17 : f32 to vector<1x8xf32>
    %24 = arith.maximumf %22, %23 : vector<1x8xf32>
    %25 = math.exp %24 : vector<1x8xf32>
    %c0_18 = arith.constant 0 : index
    %c0_19 = arith.constant 0 : index
    %26 = vector.load %arg2[%c0_18, %c0_19] : memref<8x8xf32, #tpu.memory_space<vmem>>, vector<8x8xf32>
    %27 = vector.broadcast %25 : vector<1x8xf32> to vector<8x8xf32>
    %28 = arith.mulf %27, %26 : vector<8x8xf32>
    %29 = arith.addf %20, %28 : vector<8x8xf32>
    %c0_20 = arith.constant 0 : index
    %c0_21 = arith.constant 0 : index
    %30 = vector.load %arg10[%c0_20, %c0_21] : memref<8x8xf32, #tpu.memory_space<vmem>>, vector<8x8xf32>
    tpu.vector_store %arg10[%c0_20, %c0_21], %29 {strides = array<i32>} : memref<8x8xf32, #tpu.memory_space<vmem>>, vector<8x8xf32>,
    return
  }
  func.func @transform_0(%arg0: i32) -> (i32, i32) {
    %c0_i32 = arith.constant 0 : i32
    %c0_i32_0 = arith.constant 0 : i32
    return %arg0, %c0_i32 : i32, i32
  }
  func.func @transform_1(%arg0: i32) -> (i32, i32) {
    %c0_i32 = arith.constant 0 : i32
    %c0_i32_0 = arith.constant 0 : i32
    return %arg0, %c0_i32 : i32, i32
  }
  func.func @transform_2(%arg0: i32) -> (i32, i32) {
    %c0_i32 = arith.constant 0 : i32
    %c0_i32_0 = arith.constant 0 : i32
    %c0_i32_1 = arith.constant 0 : i32
    return %c0_i32, %c0_i32_0 : i32, i32
  }
  func.func @transform_3(%arg0: i32) -> (i32, i32) {
    %c0_i32 = arith.constant 0 : i32
    %c0_i32_0 = arith.constant 0 : i32
    %c0_i32_1 = arith.constant 0 : i32
    return %c0_i32, %c0_i32_0 : i32, i32
  }
  func.func @transform_4(%arg0: i32) -> (i32, i32) {
    %c0_i32 = arith.constant 0 : i32
    %c0_i32_0 = arith.constant 0 : i32
    %c0_i32_1 = arith.constant 0 : i32
    return %c0_i32, %c0_i32_0 : i32, i32
  }
  func.func @transform_5(%arg0: i32) -> (i32, i32) {
    %c0_i32 = arith.constant 0 : i32
    %c0_i32_0 = arith.constant 0 : i32
    %c0_i32_1 = arith.constant 0 : i32
    return %c0_i32, %c0_i32_0 : i32, i32
  }
  func.func @transform_6(%arg0: i32) -> (i32, i32) {
    %c0_i32 = arith.constant 0 : i32
    %c0_i32_0 = arith.constant 0 : i32
    %c0_i32_1 = arith.constant 0 : i32
    return %c0_i32, %c0_i32_0 : i32, i32
  }
  func.func @transform_7(%arg0: i32) -> (i32, i32) {
    %c0_i32 = arith.constant 0 : i32
    %c0_i32_0 = arith.constant 0 : i32
    %c0_i32_1 = arith.constant 0 : i32
    return %c0_i32, %c0_i32_0 : i32, i32
  }
  func.func @transform_8(%arg0: i32) -> (i32, i32) {
    %c0_i32 = arith.constant 0 : i32
    %c0_i32_0 = arith.constant 0 : i32
    %c0_i32_1 = arith.constant 0 : i32
    return %c0_i32, %c0_i32_0 : i32, i32
  }
  func.func @transform_9(%arg0: i32) -> (i32, i32) {
    %c0_i32 = arith.constant 0 : i32
    %c0_i32_0 = arith.constant 0 : i32
    return %arg0, %c0_i32 : i32, i32
  }
}

</mosaic_0001>

<llo_original>
// kernel: tpu_custom_call.1
$region0: #{tpu_custom_call.1}
  #allocation0 [shape = 'u32[]', space=smem, size = 0x4, offset = 0x4, fixed_abs, tag = 'smem constant byte address 0x4 - core index']
  #allocation1 [shape = 'u32[144,128]{1,0:T(1,128)}', space=vmem, size = 0x12000, scoped, tag = 'internal scratch']
  #allocation2 [shape = 'f32[1,1]{1,0:T(1,128)S(6)}', space=smem, size = 0x200, scoped, tag = 'scoped memory for tpu_custom_call.1']
  %s0 = inlined_call_operand.vmem [shape: f32[8,72], index: 0, kind: input, shape index: {}]
  %s1 = inlined_call_operand.vmem [shape: f32[8,8], index: 1, kind: input, shape index: {}]
  %s2 = inlined_call_operand.hbm [shape: bf16[72,128], index: 2, kind: input, shape index: {}]
  %s3 = inlined_call_operand.vmem [shape: f32[1,128], index: 3, kind: input, shape index: {}]
  %s4 = inlined_call_operand.vmem [shape: bf16[128,128], index: 4, kind: input, shape index: {}]
  %s5 = inlined_call_operand.vmem [shape: f32[1,128], index: 5, kind: input, shape index: {}]
  %s6 = inlined_call_operand.vmem [shape: bf16[128,8], index: 6, kind: input, shape index: {}]
  %s7 = inlined_call_operand.vmem [shape: f32[1,8], index: 7, kind: input, shape index: {}]
  %s8 = inlined_call_operand.<no memory space> [shape: f32[1,1], index: 8, kind: input, shape index: {}]
  %s9 = inlined_call_operand.hbm [shape: f32[8,8], index: 9, kind: output, shape index: {}]
  %s10 = sld [smem:[#allocation0]]
  $region50: #{tpu_custom_call.1} parent=0
    _
  %s12 = ssub.s32 1, %s10
  %s13 = scalar_select 0, %s12, %s10
  %14 = sst [smem:[#allocation2]] %s8
  $region1: #{tpu_custom_call.1} parent=0
    #allocation3 [shape = 'u8[18432]{0}', space=vmem, size = 0x4800, scoped, tag = 'input window, operand 2, single buffered']
    #allocation4 [shape = 's32[1]{0}', space=sflag, size = 0x4, scoped, tag = 'scoped memory for tpu_custom_call.1']
    #allocation5 [shape = 's32[1]{0}', space=sflag, size = 0x4, scoped, tag = 'scoped memory for tpu_custom_call.1']
    #allocation6 [shape = 'u8[4096]{0}', space=vmem, size = 0x1000, scoped, tag = 'output window, operand 0, single buffered']
    %15 = vsyncpa [#allocation4], 0
    %16 = vsyncpa [#allocation5], 0
    // Predicated region
    $region2: #{tpu_custom_call.1} parent=1 // pred_check
      _
    $region3: #{tpu_custom_call.1} parent=1 // pred_check_branch
      %18 = sbr.rel (0) target = $region5
    $region4: #{tpu_custom_call.1} parent=1 // pred_region
      _
    $region5: #{tpu_custom_call.1} parent=1 // pred_fallthru
      _
    // Predicated region
    $region6: #{tpu_custom_call.1} parent=1 // pred_check
      _
    $region7: #{tpu_custom_call.1} parent=1 // pred_check_branch
      %20 = sbr.rel (0) target = $region9
    $region8: #{tpu_custom_call.1} parent=1 // pred_region
      _
    $region9: #{tpu_custom_call.1} parent=1 // pred_fallthru
      _
    // Predicated region
    $region10: #{tpu_custom_call.1} parent=1 // pred_check
      _
    $region11: #{tpu_custom_call.1} parent=1 // pred_check_branch
      %22 = sbr.rel (0) target = $region13
    $region12: #{tpu_custom_call.1} parent=1 // pred_region
      %s24 = ssub.s32 576, 576
      %25 = vsyncadd [#allocation4], %s24
      %s26 = sshll.u32 [#allocation3], 4
      %s27 = int_to_ptr.vmem [resolvable:$true] %s26
      %32 = dma.hbm_to_vmem [thread:$0]  %s2, 576, %s27, [#allocation4], 64, 64, 4
    $region13: #{tpu_custom_call.1} parent=1 // pred_fallthru
      _
    // Predicated region
    $region14: #{tpu_custom_call.1} parent=1 // pred_check
      _
    $region15: #{tpu_custom_call.1} parent=1 // pred_check_branch
      %34 = sbr.rel (0) target = $region17
    $region16: #{tpu_custom_call.1} parent=1 // pred_region
      _
    $region17: #{tpu_custom_call.1} parent=1 // pred_fallthru
      _
    // Predicated region
    $region18: #{tpu_custom_call.1} parent=1 // pred_check
      _
    $region19: #{tpu_custom_call.1} parent=1 // pred_check_branch
      %36 = sbr.rel (0) target = $region21
    $region20: #{tpu_custom_call.1} parent=1 // pred_region
      _
    $region21: #{tpu_custom_call.1} parent=1 // pred_fallthru
      _
    // Predicated region
    $region22: #{tpu_custom_call.1} parent=1 // pred_check
      _
    $region23: #{tpu_custom_call.1} parent=1 // pred_check_branch
      %38 = sbr.rel (0) target = $region25
    $region24: #{tpu_custom_call.1} parent=1 // pred_region
      _
    $region25: #{tpu_custom_call.1} parent=1 // pred_fallthru
      _
    // Predicated region
    $region26: #{tpu_custom_call.1} parent=1 // pred_check
      _
    $region27: #{tpu_custom_call.1} parent=1 // pred_check_branch
      %40 = sbr.rel (0) target = $region29
    $region28: #{tpu_custom_call.1} parent=1 // pred_region
      _
    $region29: #{tpu_custom_call.1} parent=1 // pred_fallthru
      _
    // Predicated region
    $region30: #{tpu_custom_call.1} parent=1 // pred_check
      _
    $region31: #{tpu_custom_call.1} parent=1 // pred_check_branch
      %42 = sbr.rel (0) target = $region33
    $region32: #{tpu_custom_call.1} parent=1 // pred_region
      _
    $region33: #{tpu_custom_call.1} parent=1 // pred_fallthru
      _
    // Predicated region
    $region34: #{tpu_custom_call.1} parent=1 // pred_check
      _
    $region35: #{tpu_custom_call.1} parent=1 // pred_check_branch
      %44 = sbr.rel (0) target = $region37
    $region36: #{tpu_custom_call.1} parent=1 // pred_region
      _
    $region37: #{tpu_custom_call.1} parent=1 // pred_fallthru
      _
    // Predicated region
    $region38: #{tpu_custom_call.1} parent=1 // pred_check
      _
    $region39: #{tpu_custom_call.1} parent=1 // pred_check_branch
      %46 = sbr.rel (0) target = $region41
    $region40: #{tpu_custom_call.1} parent=1 // pred_region
      %47 = dma.done [#allocation4], 576
    $region41: #{tpu_custom_call.1} parent=1 // pred_fallthru
      _
    %v49 = vld [vmem:[%s0] sm:$0xff]
    %v50 = vpack.c.bf16 %v49, %v49
    %v51 = vld [vmem:[#allocation3] sm:$0xf]
    %v52 = vld [vmem:[#allocation3 + $0x4] sm:$0xf]
    %v53 = vld [vmem:[#allocation3 + $0x8] sm:$0xf]
    %v54 = vld [vmem:[#allocation3 + $0xc] sm:$0xf]
    %v55 = vld [vmem:[#allocation3 + $0x10] sm:$0xf]
    %v56 = vld [vmem:[#allocation3 + $0x14] sm:$0xf]
    %v57 = vld [vmem:[#allocation3 + $0x18] sm:$0xf]
    %v58 = vld [vmem:[#allocation3 + $0x1c] sm:$0xf]
    %v59 = vld [vmem:[#allocation3 + $0x20] sm:$0xf]
    %v60 = vld [vmem:[%s3] sm:$0x1]
    %v62 = vlaneseq
    %v63 = vshrl.u32 %v62, 7
    %v64 = vsub.s32 0, %v63
    %v65 = vrot.slane %v60, %v64
    %v76 = vunpack.c.l.b16 %v51
    %v77 = vunpack.c.l.b16 %v52
    %v78 = vunpack.c.l.b16 %v53
    %v79 = vunpack.c.l.b16 %v54
    %v80 = vunpack.c.l.b16 %v55
    %v81 = vunpack.c.l.b16 %v56
    %v82 = vunpack.c.l.b16 %v57
    %v83 = vunpack.c.l.b16 %v58
    %v84 = vunpack.c.l.b16 %v59
    %v85 = vpack.c.b16 %v77, %v76
    %v86 = vpack.c.b16 %v79, %v78
    %v87 = vpack.c.b16 %v81, %v80
    %v88 = vpack.c.b16 %v83, %v82
    %v89 = vpack.c.b16 %v84, %v84
    %vm94 = vcmask 588800
    %v96 = vsel %vm94, %v50, 0
    %vm98 = vcmask 1043456
    %v100 = vsel %vm98, %v89, 0
    %102 = vmatprep.subr.bf16.mxu0 0
    %103 = vmatpush1.bf16.msra.mxu0 %v85
    %104 = vmatprep.subr.bf16.mxu0 0
    %105 = vmatpush1.bf16.msra.mxu0 %v86
    %106 = vmatprep.subr.bf16.mxu0 0
    %107 = vmatpush1.bf16.msra.mxu0 %v87
    %108 = vmatprep.subr.bf16.mxu0 0
    %109 = vmatpush1.bf16.msra.mxu0 %v88
    %110 = vmatprep.subr.bf16.mxu0 0
    %111 = vmatpush1.bf16.msra.mxu0 %v100
    %112 = vmatprep.subr.bf16.mxu0 0
    %113 = vmatpush1.bf16.msra.mxu0 0
    %114 = vmatprep.subr.bf16.mxu0 0
    %115 = vmatpush1.bf16.msra.mxu0 0
    %116 = vmatprep.subr.bf16.mxu0 0
    %117 = vmatpush1.bf16.msra.mxu0 0
    %118 = vmatprep.subr.bf16.mxu0 0
    %119 = vmatpush1.bf16.msra.mxu0 0
    %120 = vmatprep.subr.bf16.mxu0 0
    %121 = vmatpush1.bf16.msra.mxu0 0
    %122 = vmatprep.subr.bf16.mxu0 0
    %123 = vmatpush1.bf16.msra.mxu0 0
    %124 = vmatprep.subr.bf16.mxu0 0
    %125 = vmatpush1.bf16.msra.mxu0 0
    %126 = vmatprep.subr.bf16.mxu0 0
    %127 = vmatpush1.bf16.msra.mxu0 0
    %128 = vmatprep.subr.bf16.mxu0 0
    %129 = vmatpush1.bf16.msra.mxu0 0
    %130 = vmatprep.subr.bf16.mxu0 0
    %131 = vmatpush1.bf16.msra.mxu0 0
    %132 = vmatprep.subr.bf16.mxu0 0
    %133 = vmatpush1.bf16.msra.mxu0 0
    %134 = vmatprep.mubr.bf16.mxu0 0
    %135 = vmatmul.mubr.bf16.gmra.mrb[0].mxu0 %v96
    %v136 = vpop.f32.mrb[0].mxu0
    %v137 = vadd.f32 %v65, %v136
    %v138 = vpop.f32.mrb[0].mxu0
    %v139 = vpop.f32.mrb[0].mxu0
    %v140 = vpop.f32.mrb[0].mxu0
    %141 = vdwg.mxu0
    %v142 = vtanh.pop %v137
    %v143 = vpack.c.bf16 %v142, %v142
    %v144 = vld [vmem:[%s4] sm:$0xf]
    %v145 = vld [vmem:[%s4 + $0x4] sm:$0xf]
    %v146 = vld [vmem:[%s4 + $0x8] sm:$0xf]
    %v147 = vld [vmem:[%s4 + $0xc] sm:$0xf]
    %v148 = vld [vmem:[%s4 + $0x10] sm:$0xf]
    %v149 = vld [vmem:[%s4 + $0x14] sm:$0xf]
    %v150 = vld [vmem:[%s4 + $0x18] sm:$0xf]
    %v151 = vld [vmem:[%s4 + $0x1c] sm:$0xf]
    %v152 = vld [vmem:[%s4 + $0x20] sm:$0xf]
    %v153 = vld [vmem:[%s4 + $0x24] sm:$0xf]
    %v154 = vld [vmem:[%s4 + $0x28] sm:$0xf]
    %v155 = vld [vmem:[%s4 + $0x2c] sm:$0xf]
    %v156 = vld [vmem:[%s4 + $0x30] sm:$0xf]
    %v157 = vld [vmem:[%s4 + $0x34] sm:$0xf]
    %v158 = vld [vmem:[%s4 + $0x38] sm:$0xf]
    %v159 = vld [vmem:[%s4 + $0x3c] sm:$0xf]
    %v160 = vld [vmem:[%s5] sm:$0x1]
    %v162 = vlaneseq
    %v163 = vshrl.u32 %v162, 7
    %v164 = vsub.s32 0, %v163
    %v165 = vrot.slane %v160, %v164
    %v183 = vunpack.c.l.b16 %v144
    %v184 = vunpack.c.l.b16 %v145
    %v185 = vunpack.c.l.b16 %v146
    %v186 = vunpack.c.l.b16 %v147
    %v187 = vunpack.c.l.b16 %v148
    %v188 = vunpack.c.l.b16 %v149
    %v189 = vunpack.c.l.b16 %v150
    %v190 = vunpack.c.l.b16 %v151
    %v191 = vunpack.c.l.b16 %v152
    %v192 = vunpack.c.l.b16 %v153
    %v193 = vunpack.c.l.b16 %v154
    %v194 = vunpack.c.l.b16 %v155
    %v195 = vunpack.c.l.b16 %v156
    %v196 = vunpack.c.l.b16 %v157
    %v197 = vunpack.c.l.b16 %v158
    %v198 = vunpack.c.l.b16 %v159
    %v199 = vpack.c.b16 %v184, %v183
    %v200 = vpack.c.b16 %v186, %v185
    %v201 = vpack.c.b16 %v188, %v187
    %v202 = vpack.c.b16 %v190, %v189
    %v203 = vpack.c.b16 %v192, %v191
    %v204 = vpack.c.b16 %v194, %v193
    %v205 = vpack.c.b16 %v196, %v195
    %v206 = vpack.c.b16 %v198, %v197
    %215 = vmatprep.subr.bf16.mxu0 0
    %216 = vmatpush1.bf16.msra.mxu0 %v199
    %217 = vmatprep.subr.bf16.mxu0 0
    %218 = vmatpush1.bf16.msra.mxu0 %v200
    %219 = vmatprep.subr.bf16.mxu0 0
    %220 = vmatpush1.bf16.msra.mxu0 %v201
    %221 = vmatprep.subr.bf16.mxu0 0
    %222 = vmatpush1.bf16.msra.mxu0 %v202
    %223 = vmatprep.subr.bf16.mxu0 0
    %224 = vmatpush1.bf16.msra.mxu0 %v203
    %225 = vmatprep.subr.bf16.mxu0 0
    %226 = vmatpush1.bf16.msra.mxu0 %v204
    %227 = vmatprep.subr.bf16.mxu0 0
    %228 = vmatpush1.bf16.msra.mxu0 %v205
    %229 = vmatprep.subr.bf16.mxu0 0
    %230 = vmatpush1.bf16.msra.mxu0 %v206
    %231 = vmatprep.subr.bf16.mxu0 0
    %232 = vmatpush1.bf16.msra.mxu0 0
    %233 = vmatprep.subr.bf16.mxu0 0
    %234 = vmatpush1.bf16.msra.mxu0 0
    %235 = vmatprep.subr.bf16.mxu0 0
    %236 = vmatpush1.bf16.msra.mxu0 0
    %237 = vmatprep.subr.bf16.mxu0 0
    %238 = vmatpush1.bf16.msra.mxu0 0
    %239 = vmatprep.subr.bf16.mxu0 0
    %240 = vmatpush1.bf16.msra.mxu0 0
    %241 = vmatprep.subr.bf16.mxu0 0
    %242 = vmatpush1.bf16.msra.mxu0 0
    %243 = vmatprep.subr.bf16.mxu0 0
    %244 = vmatpush1.bf16.msra.mxu0 0
    %245 = vmatprep.subr.bf16.mxu0 0
    %246 = vmatpush1.bf16.msra.mxu0 0
    %247 = vmatprep.mubr.bf16.mxu0 0
    %248 = vmatmul.mubr.bf16.gmra.mrb[0].mxu0 %v143
    %v249 = vpop.f32.mrb[0].mxu0
    %v250 = vadd.f32 %v165, %v249
    %v251 = vpop.f32.mrb[0].mxu0
    %v252 = vpop.f32.mrb[0].mxu0
    %v253 = vpop.f32.mrb[0].mxu0
    %254 = vdwg.mxu0
    %v255 = vtanh.pop %v250
    %v256 = vpack.c.bf16 %v255, %v255
    %v257 = vld [vmem:[%s6] sm:$0xf]
    %v258 = vld [vmem:[%s6 + $0x4] sm:$0xf]
    %v259 = vld [vmem:[%s6 + $0x8] sm:$0xf]
    %v260 = vld [vmem:[%s6 + $0xc] sm:$0xf]
    %v261 = vld [vmem:[%s6 + $0x10] sm:$0xf]
    %v262 = vld [vmem:[%s6 + $0x14] sm:$0xf]
    %v263 = vld [vmem:[%s6 + $0x18] sm:$0xf]
    %v264 = vld [vmem:[%s6 + $0x1c] sm:$0xf]
    %v265 = vld [vmem:[%s6 + $0x20] sm:$0xf]
    %v266 = vld [vmem:[%s6 + $0x24] sm:$0xf]
    %v267 = vld [vmem:[%s6 + $0x28] sm:$0xf]
    %v268 = vld [vmem:[%s6 + $0x2c] sm:$0xf]
    %v269 = vld [vmem:[%s6 + $0x30] sm:$0xf]
    %v270 = vld [vmem:[%s6 + $0x34] sm:$0xf]
    %v271 = vld [vmem:[%s6 + $0x38] sm:$0xf]
    %v272 = vld [vmem:[%s6 + $0x3c] sm:$0xf]
    %v273 = vld [vmem:[%s7] sm:$0x1]
    %v275 = vlaneseq
    %v276 = vshrl.u32 %v275, 7
    %v277 = vsub.s32 0, %v276
    %v278 = vrot.slane %v273, %v277
    %v296 = vunpack.c.l.b16 %v257
    %v297 = vunpack.c.l.b16 %v258
    %v298 = vunpack.c.l.b16 %v259
    %v299 = vunpack.c.l.b16 %v260
    %v300 = vunpack.c.l.b16 %v261
    %v301 = vunpack.c.l.b16 %v262
    %v302 = vunpack.c.l.b16 %v263
    %v303 = vunpack.c.l.b16 %v264
    %v304 = vunpack.c.l.b16 %v265
    %v305 = vunpack.c.l.b16 %v266
    %v306 = vunpack.c.l.b16 %v267
    %v307 = vunpack.c.l.b16 %v268
    %v308 = vunpack.c.l.b16 %v269
    %v309 = vunpack.c.l.b16 %v270
    %v310 = vunpack.c.l.b16 %v271
    %v311 = vunpack.c.l.b16 %v272
    %v312 = vpack.c.b16 %v297, %v296
    %v313 = vpack.c.b16 %v299, %v298
    %v314 = vpack.c.b16 %v301, %v300
    %v315 = vpack.c.b16 %v303, %v302
    %v316 = vpack.c.b16 %v305, %v304
    %v317 = vpack.c.b16 %v307, %v306
    %v318 = vpack.c.b16 %v309, %v308
    %v319 = vpack.c.b16 %v311, %v310
    %328 = vmatprep.subr.bf16.mxu0 0
    %329 = vmatpush1.bf16.msra.mxu0 %v312
    %330 = vmatprep.subr.bf16.mxu0 0
    %331 = vmatpush1.bf16.msra.mxu0 %v313
    %332 = vmatprep.subr.bf16.mxu0 0
    %333 = vmatpush1.bf16.msra.mxu0 %v314
    %334 = vmatprep.subr.bf16.mxu0 0
    %335 = vmatpush1.bf16.msra.mxu0 %v315
    %336 = vmatprep.subr.bf16.mxu0 0
    %337 = vmatpush1.bf16.msra.mxu0 %v316
    %338 = vmatprep.subr.bf16.mxu0 0
    %339 = vmatpush1.bf16.msra.mxu0 %v317
    %340 = vmatprep.subr.bf16.mxu0 0
    %341 = vmatpush1.bf16.msra.mxu0 %v318
    %342 = vmatprep.subr.bf16.mxu0 0
    %343 = vmatpush1.bf16.msra.mxu0 %v319
    %344 = vmatprep.subr.bf16.mxu0 0
    %345 = vmatpush1.bf16.msra.mxu0 0
    %346 = vmatprep.subr.bf16.mxu0 0
    %347 = vmatpush1.bf16.msra.mxu0 0
    %348 = vmatprep.subr.bf16.mxu0 0
    %349 = vmatpush1.bf16.msra.mxu0 0
    %350 = vmatprep.subr.bf16.mxu0 0
    %351 = vmatpush1.bf16.msra.mxu0 0
    %352 = vmatprep.subr.bf16.mxu0 0
    %353 = vmatpush1.bf16.msra.mxu0 0
    %354 = vmatprep.subr.bf16.mxu0 0
    %355 = vmatpush1.bf16.msra.mxu0 0
    %356 = vmatprep.subr.bf16.mxu0 0
    %357 = vmatpush1.bf16.msra.mxu0 0
    %358 = vmatprep.subr.bf16.mxu0 0
    %359 = vmatpush1.bf16.msra.mxu0 0
    %360 = vmatprep.mubr.bf16.mxu0 0
    %361 = vmatmul.mubr.bf16.gmra.mrb[0].mxu0 %v256
    %v362 = vpop.f32.mrb[0].mxu0
    %v363 = vadd.f32 %v278, %v362
    %v364 = vpop.f32.mrb[0].mxu0
    %v365 = vpop.f32.mrb[0].mxu0
    %v366 = vpop.f32.mrb[0].mxu0
    %367 = vdwg.mxu0
    %s368 = sld [smem:[#allocation2]]
    %v369 = vstv %s368
    %v370 = vmax.f32 %v369, -13.815511
    %v371 = vmul.f32 %v370, 1.442695
    %v372 = vpow.pop %v371
    %v373 = vld [vmem:[%s1] sm:$0xff]
    %v374 = vmul.f32 %v372, %v373
    %v375 = vadd.f32 %v363, %v374
    %vm376 = vcmask 64512
    %377 = vst.msk [vmem:[#allocation6] sm:$0xff] %vm376, %v375
    // Predicated region
    $region42: #{tpu_custom_call.1} parent=1 // pred_check
      _
    $region43: #{tpu_custom_call.1} parent=1 // pred_check_branch
      %379 = sbr.rel (0) target = $region45
    $region44: #{tpu_custom_call.1} parent=1 // pred_region
      %s381 = ssub.s32 128, 128
      %382 = vsyncadd [#allocation5], %s381
      %s384 = sshll.u32 [#allocation6], 4
      %s385 = int_to_ptr.vmem [resolvable:$true] %s384
      %387 = dma.vmem_to_hbm [thread:$0]  %s385, 128, %s9, [#allocation5]
    $region45: #{tpu_custom_call.1} parent=1 // pred_fallthru
      _
    // Predicated region
    $region46: #{tpu_custom_call.1} parent=1 // pred_check
      _
    $region47: #{tpu_custom_call.1} parent=1 // pred_check_branch
      %389 = sbr.rel (0) target = $region49
    $region48: #{tpu_custom_call.1} parent=1 // pred_region
      %390 = dma.done [#allocation5], 128
    $region49: #{tpu_custom_call.1} parent=1 // pred_fallthru
      _
    %391 = vsyncpa [#allocation4], 1
    %392 = vsyncpa [#allocation5], 1

</llo_original>
